<compile_context>
chip_gen: v7x
topology: tpu7x:2x2x1
jax: 0.10.0
libtpu: 0.0.40
codegen_flags: <defaults>
</compile_context>

<pallas_src>
import jax
import jax.numpy as jnp
from jax.experimental import pallas as pl
from jax.experimental.pallas import tpu as pltpu


# ----------------------------------------------------------------------------
# Pallas kernel: per-row logsumexp
# ----------------------------------------------------------------------------
def _lse_kernel(pred_ref, lse_ref):
    """pred_ref: (TN, C) logits (native dtype) -> lse_ref: (TN, 1) f32."""
    logits = pred_ref[...].astype(jnp.float32)                # (TN, C)
    m = jnp.max(logits, axis=-1, keepdims=True)               # (TN, 1)
    s = jnp.sum(jnp.exp(logits - m), axis=-1, keepdims=True)  # (TN, 1)
    lse_ref[...] = m + jnp.log(s)


# ----------------------------------------------------------------------------
# tiling / VMEM sizing helpers
# ----------------------------------------------------------------------------
def _round_up(x, m):
    return (x + m - 1) // m * m


def _cdiv(a, b):
    return (a + b - 1) // b


def _vmem_capacity_bytes():
    """Physical VMEM per TensorCore; conservative (v7x-like) fallback."""
    try:
        return int(pltpu.get_tpu_info().vmem_capacity_bytes)
    except Exception:
        return 64 * 1024 * 1024


def _pick_tile_n(n, c, in_bytes, vmem_limit):
    """Row tile sized from the true per-tile VMEM working set.

    Per row of the tile we budget:
      2 * C * in_bytes   double-buffered native-dtype logits block
      ~2.5 * C * 4       f32 in-kernel temporaries (upcast logits, exp(x-m))
      2 * 512            (tile_n, 1) f32 output block, (8,128)-tile padded, x2

    Returns None when even an 8-row tile would not fit (huge-C fallback).
    """
    budget = (vmem_limit * 3) // 4          # headroom for compiler scratch
    per_row = 2 * c * in_bytes + (5 * c * 4) // 2 + 2 * 512
    t = budget // per_row
    if t < 8:
        return None                         # caller falls back to XLA LSE

    if t >= 128:
        tile_n = min(8192, (t // 128) * 128)
        n128 = _round_up(n, 128)
        tile_n = min(tile_n, n128)          # don't tile wider than the problem
        # v7x megacore: prefer an even number (>=2) of tiles on the
        # "parallel" axis when the row count allows it.
        nt = _cdiv(n128, tile_n)
        if tile_n > 128 and nt <= 8 and nt % 2 == 1:
            tile_n = min(tile_n, _round_up(_cdiv(n128, nt + 1), 128))
        return tile_n

    # large C: rows-per-tile below 128; only the sublane (8) constraint applies
    return min((t // 8) * 8, _round_up(n, 8))


# ----------------------------------------------------------------------------
# wrapper
# ----------------------------------------------------------------------------
def _row_logsumexp(cls_score):
    """Per-row logsumexp of an (N, C) logits array, f32 output of shape (N,)."""
    N, C = cls_score.shape
    in_bytes = jnp.dtype(cls_score.dtype).itemsize

    vmem_cap = _vmem_capacity_bytes()
    vmem_limit = min((vmem_cap * 3) // 4, 64 * 1024 * 1024)

    tile_n = _pick_tile_n(N, C, in_bytes, vmem_limit)
    if tile_n is None:
        # TODO(synk): class-axis-tiled online-LSE Pallas kernel for huge C.
        return jax.nn.logsumexp(cls_score.astype(jnp.float32), axis=-1)

    n_pad = _round_up(N, tile_n)
    num_tiles = n_pad // tile_n

    x = cls_score
    if n_pad != N:
        # padded rows are all-zero logits -> lse = log(C), finite; sliced off.
        x = jnp.pad(x, ((0, n_pad - N), (0, 0)))

    cost = pl.CostEstimate(
        flops=4 * n_pad * C,
        transcendentals=n_pad * C + n_pad,
        bytes_accessed=n_pad * C * in_bytes + n_pad * 4,
    )

    lse = pl.pallas_call(
        _lse_kernel,
        out_shape=jax.ShapeDtypeStruct((n_pad, 1), jnp.float32),
        grid_spec=pltpu.PrefetchScalarGridSpec(
            num_scalar_prefetch=0,
            grid=(num_tiles,),
            in_specs=[pl.BlockSpec((tile_n, C), lambda i: (i, 0))],
            out_specs=pl.BlockSpec((tile_n, 1), lambda i: (i, 0)),
        ),
        compiler_params=pltpu.CompilerParams(
            # row tiles are independent -> lets v7x shard across both TCs
            dimension_semantics=("parallel",),
            vmem_limit_bytes=vmem_limit,
        ),
        cost_estimate=cost,
    )(x)

    return lse.reshape(n_pad)[:N]


def _cross_entropy_pallas(cls_score, label, weight=None, reduction='mean',
                          avg_factor=None):
    N, C = cls_score.shape

    # heavy part (reads N*C logits) in Pallas:
    lse = _row_logsumexp(cls_score)                               # (N,) f32

    # cheap N-element work in the wrapper (labeled-logit gather + weighting):
    label_i = label.astype(jnp.int32).reshape(N)
    picked = jnp.take_along_axis(cls_score, label_i[:, None], axis=-1)
    picked = picked.reshape(N).astype(jnp.float32)
    per_row = lse - picked
    if weight is not None:
        per_row = per_row * weight.astype(jnp.float32).reshape(N)

    # weight_reduce_loss semantics
    if reduction == 'none':
        return per_row
    if avg_factor is None:
        if reduction == 'mean':
            return jnp.mean(per_row)
        return jnp.sum(per_row)                                   # 'sum'
    if reduction == 'mean':
        return jnp.sum(per_row) / jnp.float32(avg_factor)
    raise ValueError('avg_factor can not be used with reduction="sum"')


class CrossEntropyLoss:
    """JAX/Pallas port of mmdet CrossEntropyLoss (default softmax CE path)."""

    def __init__(self, use_sigmoid=False, use_diluted=False, use_mask=False,
                 reduction='mean', loss_weight=1.0):
        assert use_sigmoid is False or use_mask is False
        # TODO(synk): sigmoid / diluted / mask criterion variants not ported;
        # only the default `cross_entropy` path is implemented in Pallas.
        assert not (use_sigmoid or use_diluted or use_mask), \
            "only the default softmax cross-entropy path is implemented"
        self.reduction = reduction
        self.loss_weight = loss_weight

    def __call__(self, cls_score, label, weight=None, avg_factor=None,
                 reduction_override=None):
        assert reduction_override in (None, 'none', 'mean', 'sum')
        reduction = reduction_override if reduction_override else self.reduction
        # NOTE: labels are assumed to lie in [0, C) (no ignore_index handling,
        # matching mmdet's usage of F.cross_entropy with valid labels).
        loss = _cross_entropy_pallas(cls_score, label, weight=weight,
                                     reduction=reduction,
                                     avg_factor=avg_factor)
        return self.loss_weight * loss


# ----------------------------------------------------------------------------
# reference + self-test
# ----------------------------------------------------------------------------
def _ref_loss(cls_score, label, weight):
    logp = jax.nn.log_softmax(cls_score.astype(jnp.float32), axis=-1)
    per = -jnp.take_along_axis(logp, label[:, None], axis=-1)[:, 0]
    if weight is not None:
        per = per * weight.astype(jnp.float32)
    return per


if __name__ == "__main__":
    key = jax.random.PRNGKey(0)
    k1, k2, k3, k4, k5 = jax.random.split(key, 5)

    loss_mod = CrossEntropyLoss(reduction='mean', loss_weight=1.0)

    # --- small f32 check (16 samples, 16 classes) -------------------------
    N, C = 16, 16
    cls_score = jax.random.normal(k1, (N, C), dtype=jnp.float32)
    label = jax.random.randint(k2, (N,), 0, C, dtype=jnp.int32)
    weight = jax.random.uniform(k3, (N,), dtype=jnp.float32)

    out_mean = loss_mod(cls_score, label, weight=weight)
    out_none = loss_mod(cls_score, label, weight=weight,
                        reduction_override='none')
    out_sum = loss_mod(cls_score, label, weight=weight,
                       reduction_override='sum')
    jax.block_until_ready((out_mean, out_none, out_sum))

    ref_none = _ref_loss(cls_score, label, weight)
    assert jnp.allclose(out_none, ref_none, atol=1e-5, rtol=1e-5)
    assert jnp.allclose(out_mean, jnp.mean(ref_none), atol=1e-5, rtol=1e-5)
    assert jnp.allclose(out_sum, jnp.sum(ref_none), atol=1e-5, rtol=1e-5)

    # avg_factor path (mean) + avg_factor with 'sum' must raise
    out_af = loss_mod(cls_score, label, weight=weight, avg_factor=7.0)
    jax.block_until_ready(out_af)
    assert jnp.allclose(out_af, jnp.sum(ref_none) / 7.0, atol=1e-5, rtol=1e-5)
    try:
        loss_mod(cls_score, label, weight=weight, avg_factor=7.0,
                 reduction_override='sum')
        raise AssertionError("expected ValueError for avg_factor with 'sum'")
    except ValueError:
        pass

    # --- non-multiple-of-tile row count + no weight (padding + 2-tile grid) -
    N2, C2 = 300, 96
    cls2 = jax.random.normal(k4, (N2, C2), dtype=jnp.float32)
    lab2 = jax.random.randint(k5, (N2,), 0, C2, dtype=jnp.int32)
    out2 = loss_mod(cls2, lab2)                       # mean, no weight
    jax.block_until_ready(out2)
    ref2 = jnp.mean(_ref_loss(cls2, lab2, None))
    assert jnp.allclose(out2, ref2, atol=1e-5, rtol=1e-5)

    # --- native bf16 logits path (no wrapper-side f32 copy of the logits) ---
    cls_bf16 = cls_score.astype(jnp.bfloat16)
    out_bf16 = loss_mod(cls_bf16, label, weight=weight,
                        reduction_override='sum')
    jax.block_until_ready(out_bf16)
    ref_bf16 = jnp.sum(_ref_loss(cls_bf16.astype(jnp.float32), label, weight))
    assert jnp.allclose(out_bf16, ref_bf16, atol=1e-3, rtol=1e-3)

    print("KERNEL_OK")
</pallas_src>

<mosaic_0001>
module attributes {stable_mosaic.version = 11 : i64} {
  func.func @_lse_kernel(%arg0: i32, %arg1: memref<128x16xf32, #tpu.memory_space<vmem>>, %arg2: memref<128x1xf32, #tpu.memory_space<vmem>>) attributes {dimension_semantics = [#tpu.dimension_semantics<parallel>], iteration_bounds = array<i64: 1>, scalar_prefetch = 0 : i64, scratch_operands = 0 : i64, tpu.core_type = #tpu.core_type<tc>, window_params = [{transform_indices = @transform_0, window_bounds = array<i64: 128, 16>}, {transform_indices = @transform_1, window_bounds = array<i64: 128, 1>}]} {
    %c0 = arith.constant 0 : index
    %c0_0 = arith.constant 0 : index
    %0 = vector.load %arg1[%c0, %c0_0] : memref<128x16xf32, #tpu.memory_space<vmem>>, vector<128x16xf32>
    %cst = arith.constant dense<0xFF800000> : vector<128xf32>
    %1 = vector.multi_reduction <maximumf>, %0, %cst [1] : vector<128x16xf32> to vector<128xf32>
    %2 = vector.shape_cast %1 : vector<128xf32> to vector<128x1xf32>
    %3 = vector.broadcast %2 : vector<128x1xf32> to vector<128x16xf32>
    %4 = arith.subf %0, %3 : vector<128x16xf32>
    %5 = math.exp %4 : vector<128x16xf32>
    %cst_1 = arith.constant dense<0.000000e+00> : vector<128xf32>
    %6 = vector.multi_reduction <add>, %5, %cst_1 [1] : vector<128x16xf32> to vector<128xf32>
    %7 = vector.shape_cast %6 : vector<128xf32> to vector<128x1xf32>
    %8 = math.log %7 : vector<128x1xf32>
    %9 = arith.addf %2, %8 : vector<128x1xf32>
    %c0_2 = arith.constant 0 : index
    %c0_3 = arith.constant 0 : index
    %10 = vector.load %arg2[%c0_2, %c0_3] : memref<128x1xf32, #tpu.memory_space<vmem>>, vector<128x1xf32>
    tpu.vector_store %arg2[%c0_2, %c0_3], %9 {strides = array<i32>} : memref<128x1xf32, #tpu.memory_space<vmem>>, vector<128x1xf32>,
    return
  }
  func.func @transform_0(%arg0: i32) -> (i32, i32) {
    %c0_i32 = arith.constant 0 : i32
    %c0_i32_0 = arith.constant 0 : i32
    return %arg0, %c0_i32 : i32, i32
  }
  func.func @transform_1(%arg0: i32) -> (i32, i32) {
    %c0_i32 = arith.constant 0 : i32
    %c0_i32_0 = arith.constant 0 : i32
    return %arg0, %c0_i32 : i32, i32
  }
}

</mosaic_0001>

<llo_original>
// kernel: tpu_custom_call.1
$region0: #{tpu_custom_call.1}
  #allocation0 [shape = 'u32[]', space=smem, size = 0x4, offset = 0x4, fixed_abs, tag = 'smem constant byte address 0x4 - core index']
  #allocation1 [shape = 'u32[144,128]{1,0:T(1,128)}', space=vmem, size = 0x12000, scoped, tag = 'internal scratch']
  %s0 = inlined_call_operand.vmem [shape: f32[128,16], index: 0, kind: input, shape index: {}]
  %s1 = inlined_call_operand.vmem [shape: f32[128,1], index: 1, kind: output, shape index: {}]
  %s2 = sld [smem:[#allocation0]]
  $region14: #{tpu_custom_call.1} parent=0
    _
  %s4 = ssub.s32 1, %s2
  %s5 = scalar_select 0, %s4, %s2
  // Predicated region
  $region2: #{tpu_custom_call.1} parent=0 // pred_check
    _
  $region3: #{tpu_custom_call.1} parent=0 // pred_check_branch
    %7 = sbr.rel (0) target = $region5
  $region4: #{tpu_custom_call.1} parent=0 // pred_region
    _
  $region5: #{tpu_custom_call.1} parent=0 // pred_fallthru
    _
  %v8 = vld [vmem:[%s0] sm:$0xff]
  %v9 = vld [vmem:[%s0 + $0x8] sm:$0xff]
  %v10 = vld [vmem:[%s0 + $0x10] sm:$0xff]
  %v11 = vld [vmem:[%s0 + $0x18] sm:$0xff]
  %v12 = vld [vmem:[%s0 + $0x20] sm:$0xff]
  %v13 = vld [vmem:[%s0 + $0x28] sm:$0xff]
  %v14 = vld [vmem:[%s0 + $0x30] sm:$0xff]
  %v15 = vld [vmem:[%s0 + $0x38] sm:$0xff]
  %v16 = vld [vmem:[%s0 + $0x40] sm:$0xff]
  %v17 = vld [vmem:[%s0 + $0x48] sm:$0xff]
  %v18 = vld [vmem:[%s0 + $0x50] sm:$0xff]
  %v19 = vld [vmem:[%s0 + $0x58] sm:$0xff]
  %v20 = vld [vmem:[%s0 + $0x60] sm:$0xff]
  %v21 = vld [vmem:[%s0 + $0x68] sm:$0xff]
  %v22 = vld [vmem:[%s0 + $0x70] sm:$0xff]
  %v23 = vld [vmem:[%s0 + $0x78] sm:$0xff]
  %vm24 = vcmask 130048
  %v25 = vsel %vm24, %v8, -inf
  %26 = vmax.xlane.f32.xlu0 %v25
  %v27 = vpop.xlane.xlu0 %26
  %v28 = vsel %vm24, %v9, -inf
  %29 = vmax.xlane.f32.xlu0 %v28
  %v30 = vpop.xlane.xlu0 %29
  %v31 = vsel %vm24, %v10, -inf
  %32 = vmax.xlane.f32.xlu0 %v31
  %v33 = vpop.xlane.xlu0 %32
  %v34 = vsel %vm24, %v11, -inf
  %35 = vmax.xlane.f32.xlu0 %v34
  %v36 = vpop.xlane.xlu0 %35
  %v37 = vsel %vm24, %v12, -inf
  %38 = vmax.xlane.f32.xlu0 %v37
  %v39 = vpop.xlane.xlu0 %38
  %v40 = vsel %vm24, %v13, -inf
  %41 = vmax.xlane.f32.xlu0 %v40
  %v42 = vpop.xlane.xlu0 %41
  %v43 = vsel %vm24, %v14, -inf
  %44 = vmax.xlane.f32.xlu0 %v43
  %v45 = vpop.xlane.xlu0 %44
  %v46 = vsel %vm24, %v15, -inf
  %47 = vmax.xlane.f32.xlu0 %v46
  %v48 = vpop.xlane.xlu0 %47
  %v49 = vsel %vm24, %v16, -inf
  %50 = vmax.xlane.f32.xlu0 %v49
  %v51 = vpop.xlane.xlu0 %50
  %v52 = vsel %vm24, %v17, -inf
  %53 = vmax.xlane.f32.xlu0 %v52
  %v54 = vpop.xlane.xlu0 %53
  %v55 = vsel %vm24, %v18, -inf
  %56 = vmax.xlane.f32.xlu0 %v55
  %v57 = vpop.xlane.xlu0 %56
  %v58 = vsel %vm24, %v19, -inf
  %59 = vmax.xlane.f32.xlu0 %v58
  %v60 = vpop.xlane.xlu0 %59
  %v61 = vsel %vm24, %v20, -inf
  %62 = vmax.xlane.f32.xlu0 %v61
  %v63 = vpop.xlane.xlu0 %62
  %v64 = vsel %vm24, %v21, -inf
  %65 = vmax.xlane.f32.xlu0 %v64
  %v66 = vpop.xlane.xlu0 %65
  %v67 = vsel %vm24, %v22, -inf
  %68 = vmax.xlane.f32.xlu0 %v67
  %v69 = vpop.xlane.xlu0 %68
  %v70 = vsel %vm24, %v23, -inf
  %71 = vmax.xlane.f32.xlu0 %v70
  %v72 = vpop.xlane.xlu0 %71
  %v73 = vsub.f32 %v8, %v27
  %v74 = vsub.f32 %v9, %v30
  %v75 = vsub.f32 %v10, %v33
  %v76 = vsub.f32 %v11, %v36
  %v77 = vsub.f32 %v12, %v39
  %v78 = vsub.f32 %v13, %v42
  %v79 = vsub.f32 %v14, %v45
  %v80 = vsub.f32 %v15, %v48
  %v81 = vsub.f32 %v16, %v51
  %v82 = vsub.f32 %v17, %v54
  %v83 = vsub.f32 %v18, %v57
  %v84 = vsub.f32 %v19, %v60
  %v85 = vsub.f32 %v20, %v63
  %v86 = vsub.f32 %v21, %v66
  %v87 = vsub.f32 %v22, %v69
  %v88 = vsub.f32 %v23, %v72
  %v89 = vmul.f32 %v73, 1.442695
  %v90 = vpow.pop %v89
  %v91 = vmul.f32 %v74, 1.442695
  %v92 = vpow.pop %v91
  %v93 = vmul.f32 %v75, 1.442695
  %v94 = vpow.pop %v93
  %v95 = vmul.f32 %v76, 1.442695
  %v96 = vpow.pop %v95
  %v97 = vmul.f32 %v77, 1.442695
  %v98 = vpow.pop %v97
  %v99 = vmul.f32 %v78, 1.442695
  %v100 = vpow.pop %v99
  %v101 = vmul.f32 %v79, 1.442695
  %v102 = vpow.pop %v101
  %v103 = vmul.f32 %v80, 1.442695
  %v104 = vpow.pop %v103
  %v105 = vmul.f32 %v81, 1.442695
  %v106 = vpow.pop %v105
  %v107 = vmul.f32 %v82, 1.442695
  %v108 = vpow.pop %v107
  %v109 = vmul.f32 %v83, 1.442695
  %v110 = vpow.pop %v109
  %v111 = vmul.f32 %v84, 1.442695
  %v112 = vpow.pop %v111
  %v113 = vmul.f32 %v85, 1.442695
  %v114 = vpow.pop %v113
  %v115 = vmul.f32 %v86, 1.442695
  %v116 = vpow.pop %v115
  %v117 = vmul.f32 %v87, 1.442695
  %v118 = vpow.pop %v117
  %v119 = vmul.f32 %v88, 1.442695
  %v120 = vpow.pop %v119
  %v121 = vsel %vm24, %v90, 0.0
  %122 = vadd.xlane.f32.xlu0 %v121
  %v123 = vpop.xlane.xlu0 %122
  %v124 = vsel %vm24, %v92, 0.0
  %125 = vadd.xlane.f32.xlu0 %v124
  %v126 = vpop.xlane.xlu0 %125
  %v127 = vsel %vm24, %v94, 0.0
  %128 = vadd.xlane.f32.xlu0 %v127
  %v129 = vpop.xlane.xlu0 %128
  %v130 = vsel %vm24, %v96, 0.0
  %131 = vadd.xlane.f32.xlu0 %v130
  %v132 = vpop.xlane.xlu0 %131
  %v133 = vsel %vm24, %v98, 0.0
  %134 = vadd.xlane.f32.xlu0 %v133
  %v135 = vpop.xlane.xlu0 %134
  %v136 = vsel %vm24, %v100, 0.0
  %137 = vadd.xlane.f32.xlu0 %v136
  %v138 = vpop.xlane.xlu0 %137
  %v139 = vsel %vm24, %v102, 0.0
  %140 = vadd.xlane.f32.xlu0 %v139
  %v141 = vpop.xlane.xlu0 %140
  %v142 = vsel %vm24, %v104, 0.0
  %143 = vadd.xlane.f32.xlu0 %v142
  %v144 = vpop.xlane.xlu0 %143
  %v145 = vsel %vm24, %v106, 0.0
  %146 = vadd.xlane.f32.xlu0 %v145
  %v147 = vpop.xlane.xlu0 %146
  %v148 = vsel %vm24, %v108, 0.0
  %149 = vadd.xlane.f32.xlu0 %v148
  %v150 = vpop.xlane.xlu0 %149
  %v151 = vsel %vm24, %v110, 0.0
  %152 = vadd.xlane.f32.xlu0 %v151
  %v153 = vpop.xlane.xlu0 %152
  %v154 = vsel %vm24, %v112, 0.0
  %155 = vadd.xlane.f32.xlu0 %v154
  %v156 = vpop.xlane.xlu0 %155
  %v157 = vsel %vm24, %v114, 0.0
  %158 = vadd.xlane.f32.xlu0 %v157
  %v159 = vpop.xlane.xlu0 %158
  %v160 = vsel %vm24, %v116, 0.0
  %161 = vadd.xlane.f32.xlu0 %v160
  %v162 = vpop.xlane.xlu0 %161
  %v163 = vsel %vm24, %v118, 0.0
  %164 = vadd.xlane.f32.xlu0 %v163
  %v165 = vpop.xlane.xlu0 %164
  %v166 = vsel %vm24, %v120, 0.0
  %167 = vadd.xlane.f32.xlu0 %v166
  %v168 = vpop.xlane.xlu0 %167
  %v169 = vlog2.pop %v123
  %v170 = vmul.f32 %v169, 0.6931472
  %v171 = vlog2.pop %v126
  %v172 = vmul.f32 %v171, 0.6931472
  %v173 = vlog2.pop %v129
  %v174 = vmul.f32 %v173, 0.6931472
  %v175 = vlog2.pop %v132
  %v176 = vmul.f32 %v175, 0.6931472
  %v177 = vlog2.pop %v135
  %v178 = vmul.f32 %v177, 0.6931472
  %v179 = vlog2.pop %v138
  %v180 = vmul.f32 %v179, 0.6931472
  %v181 = vlog2.pop %v141
  %v182 = vmul.f32 %v181, 0.6931472
  %v183 = vlog2.pop %v144
  %v184 = vmul.f32 %v183, 0.6931472
  %v185 = vlog2.pop %v147
  %v186 = vmul.f32 %v185, 0.6931472
  %v187 = vlog2.pop %v150
  %v188 = vmul.f32 %v187, 0.6931472
  %v189 = vlog2.pop %v153
  %v190 = vmul.f32 %v189, 0.6931472
  %v191 = vlog2.pop %v156
  %v192 = vmul.f32 %v191, 0.6931472
  %v193 = vlog2.pop %v159
  %v194 = vmul.f32 %v193, 0.6931472
  %v195 = vlog2.pop %v162
  %v196 = vmul.f32 %v195, 0.6931472
  %v197 = vlog2.pop %v165
  %v198 = vmul.f32 %v197, 0.6931472
  %v199 = vlog2.pop %v168
  %v200 = vmul.f32 %v199, 0.6931472
  %v201 = vadd.f32 %v27, %v170
  %v202 = vadd.f32 %v30, %v172
  %v203 = vadd.f32 %v33, %v174
  %v204 = vadd.f32 %v36, %v176
  %v205 = vadd.f32 %v39, %v178
  %v206 = vadd.f32 %v42, %v180
  %v207 = vadd.f32 %v45, %v182
  %v208 = vadd.f32 %v48, %v184
  %v209 = vadd.f32 %v51, %v186
  %v210 = vadd.f32 %v54, %v188
  %v211 = vadd.f32 %v57, %v190
  %v212 = vadd.f32 %v60, %v192
  %v213 = vadd.f32 %v63, %v194
  %v214 = vadd.f32 %v66, %v196
  %v215 = vadd.f32 %v69, %v198
  %v216 = vadd.f32 %v72, %v200
  %vm217 = vcmask 7168
  %218 = vst.msk [vmem:[%s1] sm:$0xff] %vm217, %v201
  %219 = vst.msk [vmem:[%s1 + $0x8] sm:$0xff] %vm217, %v202
  %220 = vst.msk [vmem:[%s1 + $0x10] sm:$0xff] %vm217, %v203
  %221 = vst.msk [vmem:[%s1 + $0x18] sm:$0xff] %vm217, %v204
  %222 = vst.msk [vmem:[%s1 + $0x20] sm:$0xff] %vm217, %v205
  %223 = vst.msk [vmem:[%s1 + $0x28] sm:$0xff] %vm217, %v206
  %224 = vst.msk [vmem:[%s1 + $0x30] sm:$0xff] %vm217, %v207
  %225 = vst.msk [vmem:[%s1 + $0x38] sm:$0xff] %vm217, %v208
  %226 = vst.msk [vmem:[%s1 + $0x40] sm:$0xff] %vm217, %v209
  %227 = vst.msk [vmem:[%s1 + $0x48] sm:$0xff] %vm217, %v210
  %228 = vst.msk [vmem:[%s1 + $0x50] sm:$0xff] %vm217, %v211
  %229 = vst.msk [vmem:[%s1 + $0x58] sm:$0xff] %vm217, %v212
  %230 = vst.msk [vmem:[%s1 + $0x60] sm:$0xff] %vm217, %v213
  %231 = vst.msk [vmem:[%s1 + $0x68] sm:$0xff] %vm217, %v214
  %232 = vst.msk [vmem:[%s1 + $0x70] sm:$0xff] %vm217, %v215
  %233 = vst.msk [vmem:[%s1 + $0x78] sm:$0xff] %vm217, %v216
  // Predicated region
  $region6: #{tpu_custom_call.1} parent=0 // pred_check
    _
  $region7: #{tpu_custom_call.1} parent=0 // pred_check_branch
    %235 = sbr.rel (0) target = $region9
  $region8: #{tpu_custom_call.1} parent=0 // pred_region
    _
  $region9: #{tpu_custom_call.1} parent=0 // pred_fallthru
    _
  // Predicated region
  $region10: #{tpu_custom_call.1} parent=0 // pred_check
    _
  $region11: #{tpu_custom_call.1} parent=0 // pred_check_branch
    %237 = sbr.rel (0) target = $region13
  $region12: #{tpu_custom_call.1} parent=0 // pred_region
    _
  $region13: #{tpu_custom_call.1} parent=0 // pred_fallthru
    _

</llo_original>
